<compile_context>
chip_gen: v7x
topology: tpu7x:2x2x1
jax: 0.10.0
libtpu: 0.0.40
codegen_flags: <defaults>
</compile_context>

<pallas_src>
import functools

import jax
import jax.numpy as jnp
from jax import lax
from jax.experimental import pallas as pl
from jax.experimental.pallas import tpu as pltpu


# ----------------------------------------------------------------------------
# pltpu.roll shift-convention probe (defensive: guarantees tap shifts are
# correct regardless of the rotate direction convention of the backend).
# ----------------------------------------------------------------------------
_ROLL_SIGN = None


def _roll_shift_sign():
    """Returns s such that pltpu.roll(x, (s*delta) % n, axis)[p] == x[(p+delta) % n]."""
    global _ROLL_SIGN
    if _ROLL_SIGN is None:
        def _probe(x_ref, o_ref):
            o_ref[...] = pltpu.roll(x_ref[...], 1, 1)

        x = lax.broadcasted_iota(jnp.float32, (8, 128), 1)
        out = pl.pallas_call(
            _probe, out_shape=jax.ShapeDtypeStruct((8, 128), jnp.float32)
        )(x)
        # np.roll convention: out[0,1] == x[0,0] == 0  ->  need shift = -delta
        _ROLL_SIGN = -1 if float(out[0, 1]) == 0.0 else +1
    return _ROLL_SIGN


# ----------------------------------------------------------------------------
# Fused forward kernel
# ----------------------------------------------------------------------------
def _memory_reader_kernel(*refs, n_backbone, n_skips, hw, w_img, roll_sign,
                          compute_dtype):
    """Runs backbone + heads for one batch element, activations resident in VMEM.

    Layout: activations are [C, H*W] (channels on sublanes, H*W on lanes).
    A 3x3 conv is 9 accumulated matmuls W_tap[Cout,Cin] @ shift(x)[Cin,HW].
    """
    (x_ref, m_ref, wb_ref, bb_ref, wk_ref, bk_ref, wv_ref, bv_ref) = refs[:8]
    skip_refs = refs[8:8 + n_skips]
    ctx_ref = refs[8 + n_skips]
    val_ref = refs[9 + n_skips]

    # Hoist the 9 tap-validity masks (shape (1, HW) each) out of all conv loops.
    tap_masks = [m_ref[t] for t in range(9)]

    def conv3x3(act, weight_fn, bias, relu):
        # act: (Cin, HW) float32
        acc = None
        for t in range(9):
            dh, dw = t // 3 - 1, t % 3 - 1
            delta = dh * w_img + dw
            if delta == 0:
                tap = act
            else:
                tap = pltpu.roll(act, (roll_sign * delta) % hw, 1)
                tap = tap * tap_masks[t]          # zero out-of-image taps
            part = jnp.dot(weight_fn(t).astype(compute_dtype),
                           tap.astype(compute_dtype),
                           preferred_element_type=jnp.float32)
            acc = part if acc is None else acc + part
        acc = acc + bias                          # (Cout, 1) lane-broadcast
        if relu:
            acc = jnp.maximum(acc, 0.0)
        return acc

    act = x_ref[...].astype(jnp.float32)

    for layer in range(n_backbone):
        act = conv3x3(
            act,
            lambda t, _l=layer: wb_ref[_l * 9 + t].astype(jnp.float32),
            bb_ref[layer].astype(jnp.float32),
            relu=True,
        )
        if layer < n_skips:
            skip_refs[layer][...] = act.astype(skip_refs[layer].dtype)

    # Key head with the global-context matmul folded into its weights.
    ctx = conv3x3(act, lambda t: wk_ref[t].astype(jnp.float32),
                  bk_ref[...].astype(jnp.float32), relu=False)
    # Value head.
    val = conv3x3(act, lambda t: wv_ref[t].astype(jnp.float32),
                  bv_ref[...].astype(jnp.float32), relu=False)

    ctx_ref[...] = ctx.astype(ctx_ref.dtype)
    val_ref[...] = val.astype(val_ref.dtype)


# ----------------------------------------------------------------------------
# Host-side packing helpers (tiny, pure layout work)
# ----------------------------------------------------------------------------
def _prep_conv_weights(w_hwio):
    """(3, 3, Cin, Cout) -> (9, Cout, Cin), tap index t = kh*3 + kw."""
    kh, kw, ci, co = w_hwio.shape
    return jnp.transpose(w_hwio.reshape(kh * kw, ci, co), (0, 2, 1))


def _make_tap_masks(H, W):
    """(9, 1, H*W) float mask: 1 where the shifted tap lies inside the image."""
    pos = jnp.arange(H * W, dtype=jnp.int32)
    hh, ww = pos // W, pos % W
    rows = []
    for t in range(9):
        dh, dw = t // 3 - 1, t % 3 - 1
        valid = ((hh + dh >= 0) & (hh + dh < H) &
                 (ww + dw >= 0) & (ww + dw < W))
        rows.append(valid.astype(jnp.float32))
    return jnp.stack(rows, axis=0).reshape(9, 1, H * W)


def memory_reader_forward(x_nchw, *, backbone, key, val, context_volume,
                          compute_dtype=jnp.float32):
    """Fused MemoryReader forward.

    x_nchw: [B, Cin, H, W]; backbone: list of (w_hwio, b); key/val: (w_hwio, b);
    context_volume: [valdim, keydim].
    Returns (context_distribution [B,valdim,H,W], value [B,valdim,H,W], skips).
    """
    B, Cin, H, W = x_nchw.shape
    HW = H * W
    C = backbone[0][0].shape[-1]          # backbone channel count
    Cv = context_volume.shape[0]          # valdim
    n_backbone = len(backbone)
    n_skips = min(4, n_backbone)

    # Pack weights into kernel layout.
    wb = jnp.concatenate([_prep_conv_weights(w) for w, _ in backbone], axis=0)  # (9L, C, C)
    bb = jnp.stack([b.reshape(-1, 1) for _, b in backbone], axis=0)             # (L, C, 1)
    key_w, key_b = key
    val_w, val_b = val
    wk9 = _prep_conv_weights(key_w)                                  # (9, keydim, C)
    wk_ctx = jnp.einsum("vk,tkc->tvc", context_volume, wk9)          # (9, Cv, C)
    bk_ctx = (context_volume @ key_b).reshape(-1, 1)                 # (Cv, 1)
    wv9 = _prep_conv_weights(val_w)                                  # (9, Cv, C)
    bv2 = val_b.reshape(-1, 1)                                       # (Cv, 1)

    masks = _make_tap_masks(H, W)                                    # (9, 1, HW)
    x2 = x_nchw.reshape(B, Cin, HW)                                  # NCHW-flat, no transpose

    kern = functools.partial(
        _memory_reader_kernel,
        n_backbone=n_backbone, n_skips=n_skips, hw=HW, w_img=W,
        roll_sign=_roll_shift_sign(), compute_dtype=compute_dtype)

    out_shapes = tuple(
        [jax.ShapeDtypeStruct((B, C, HW), x_nchw.dtype) for _ in range(n_skips)]
        + [jax.ShapeDtypeStruct((B, Cv, HW), x_nchw.dtype),
           jax.ShapeDtypeStruct((B, Cv, HW), x_nchw.dtype)])
    out_specs = tuple(
        [pl.BlockSpec((None, C, HW), lambda b: (b, 0, 0)) for _ in range(n_skips)]
        + [pl.BlockSpec((None, Cv, HW), lambda b: (b, 0, 0)),
           pl.BlockSpec((None, Cv, HW), lambda b: (b, 0, 0))])

    flops = 2 * B * HW * 9 * C * (n_backbone * C + 2 * Cv)
    bytes_accessed = 4 * (x2.size + masks.size + wb.size + bb.size
                          + wk_ctx.size + wv9.size
                          + B * HW * (n_skips * C + 2 * Cv))

    outs = pl.pallas_call(
        kern,
        out_shape=out_shapes,
        grid_spec=pl.GridSpec(
            grid=(B,),
            in_specs=[
                pl.BlockSpec((None, Cin, HW), lambda b: (b, 0, 0)),
                pl.BlockSpec(masks.shape, lambda b: (0, 0, 0)),
                pl.BlockSpec(wb.shape, lambda b: (0, 0, 0)),
                pl.BlockSpec(bb.shape, lambda b: (0, 0, 0)),
                pl.BlockSpec(wk_ctx.shape, lambda b: (0, 0, 0)),
                pl.BlockSpec(bk_ctx.shape, lambda b: (0, 0)),
                pl.BlockSpec(wv9.shape, lambda b: (0, 0, 0)),
                pl.BlockSpec(bv2.shape, lambda b: (0, 0)),
            ],
            out_specs=out_specs,
        ),
        compiler_params=pltpu.CompilerParams(
            dimension_semantics=("parallel",)),
        cost_estimate=pl.CostEstimate(
            flops=int(flops), transcendentals=0,
            bytes_accessed=int(bytes_accessed)),
    )(x2, masks, wb, bb, wk_ctx, bk_ctx, wv9, bv2)

    skips = [o.reshape(B, C, H, W) for o in outs[:n_skips]]
    ctx = outs[n_skips].reshape(B, Cv, H, W)
    value = outs[n_skips + 1].reshape(B, Cv, H, W)
    return ctx, value, skips


# ----------------------------------------------------------------------------
# Module equivalents (mirror the PyTorch classes)
# ----------------------------------------------------------------------------
class GlobalContextVolume:
    """Holds context_volume [valdim, keydim]; D_t = G @ q(x_t) per pixel."""

    def __init__(self, keydim, valdim, topk=0):
        self.context_volume = jnp.zeros((valdim, keydim), jnp.float32)
        self.topk = topk if topk > 0 else None
        # TODO(synk): topk selection is not applied (base-class forward is
        # NotImplemented in the PyTorch spec); the standard D = G @ q is used.

    def update(self, local_contexts):
        self.context_volume = jnp.mean(jnp.stack(local_contexts, axis=0), axis=0)

    def __call__(self, query_nchw):
        # Standalone path (plain JAX).  Inside MemoryReader this matmul is
        # folded into the fused key-conv kernel weights.
        return jnp.einsum("vk,bkhw->bvhw", self.context_volume, query_nchw)


class KeyValueEncoder:
    """Parameter container: backbone (list of conv3x3+ReLU) + key/val heads."""

    def __init__(self, params):
        self.backbone = params["backbone"]     # list of (w_hwio, b)
        self.key_w, self.key_b = params["key"]
        self.val_w, self.val_b = params["val"]


class MemoryReader:
    def __init__(self, params, keydim, valdim):
        self.query_encoder = KeyValueEncoder(params)
        self.keydim = keydim
        self.valdim = valdim

    def __call__(self, input_nchw, global_context):
        enc = self.query_encoder
        return memory_reader_forward(
            input_nchw,
            backbone=enc.backbone,
            key=(enc.key_w, enc.key_b),
            val=(enc.val_w, enc.val_b),
            context_volume=global_context.context_volume,
        )


# ----------------------------------------------------------------------------
# Deterministic parameters + pure-XLA reference + demo
# ----------------------------------------------------------------------------
def _make_params(key, conv_channels, keydim, valdim, n_backbone=5):
    params = {"backbone": []}
    for _ in range(n_backbone):
        key, k1, k2 = jax.random.split(key, 3)
        w = 0.1 * jax.random.normal(k1, (3, 3, conv_channels, conv_channels), jnp.float32)
        b = 0.1 * jax.random.normal(k2, (conv_channels,), jnp.float32)
        params["backbone"].append((w, b))
    key, k1, k2, k3, k4 = jax.random.split(key, 5)
    params["key"] = (0.1 * jax.random.normal(k1, (3, 3, conv_channels, keydim), jnp.float32),
                     0.1 * jax.random.normal(k2, (keydim,), jnp.float32))
    params["val"] = (0.1 * jax.random.normal(k3, (3, 3, conv_channels, valdim), jnp.float32),
                     0.1 * jax.random.normal(k4, (valdim,), jnp.float32))
    return params, key


def _reference_forward(x_nchw, params, context_volume):
    """Pure-JAX (XLA conv) reference for correctness checking."""
    x = jnp.transpose(x_nchw, (0, 2, 3, 1))

    def conv(x, w, b):
        dn = lax.conv_dimension_numbers(x.shape, w.shape, ("NHWC", "HWIO", "NHWC"))
        return lax.conv_general_dilated(x, w, (1, 1), "SAME", dimension_numbers=dn) + b

    skips = []
    for i, (w, b) in enumerate(params["backbone"]):
        x = jnp.maximum(conv(x, w, b), 0.0)
        if i < 4:
            skips.append(x)
    key_ = conv(x, *params["key"])
    val_ = conv(x, *params["val"])
    d = jnp.einsum("bhwk,vk->bhwv", key_, context_volume)
    to_nchw = lambda t: jnp.transpose(t, (0, 3, 1, 2))
    return to_nchw(d), to_nchw(val_), [to_nchw(s) for s in skips]


if __name__ == "__main__":
    B, conv_channels, H, W = 2, 4, 16, 16
    keydim, valdim = 8, 8

    root = jax.random.PRNGKey(0)
    params, root = _make_params(root, conv_channels, keydim, valdim)

    gcv = GlobalContextVolume(keydim, valdim)
    root, kc1, kc2 = jax.random.split(root, 3)
    gcv.update([0.1 * jax.random.normal(kc1, (valdim, keydim), jnp.float32),
                0.1 * jax.random.normal(kc2, (valdim, keydim), jnp.float32)])

    root, kx = jax.random.split(root)
    x = jax.random.normal(kx, (B, conv_channels, H, W), jnp.float32)  # NCHW input

    reader = MemoryReader(params, keydim, valdim)
    ctx_dist, value, skips = reader(x, gcv)
    jax.block_until_ready((ctx_dist, value, skips))

    # correctness check against pure-XLA reference
    ref_ctx, ref_val, ref_skips = _reference_forward(x, params, gcv.context_volume)
    assert ctx_dist.shape == (B, valdim, H, W)
    assert value.shape == (B, valdim, H, W)
    assert len(skips) == 4 and skips[0].shape == (B, conv_channels, H, W)
    assert jnp.allclose(ctx_dist, ref_ctx, atol=1e-4, rtol=1e-4)
    assert jnp.allclose(value, ref_val, atol=1e-4, rtol=1e-4)
    for s, rs in zip(skips, ref_skips):
        assert jnp.allclose(s, rs, atol=1e-4, rtol=1e-4)

    print("KERNEL_OK")
</pallas_src>

<mosaic_0001>
module attributes {stable_mosaic.version = 11 : i64} {
  func.func @_probe(%arg0: memref<8x128xf32, #tpu.memory_space<vmem>>, %arg1: memref<8x128xf32, #tpu.memory_space<vmem>>) attributes {dimension_semantics = [], scalar_prefetch = 0 : i64, scratch_operands = 0 : i64, tpu.core_type = #tpu.core_type<tc>} {
    %c0 = arith.constant 0 : index
    %c0_0 = arith.constant 0 : index
    %0 = vector.load %arg0[%c0, %c0_0] : memref<8x128xf32, #tpu.memory_space<vmem>>, vector<8x128xf32>
    %c1_i32 = arith.constant 1 : i32
    %1 = tpu.dynamic_rotate %0 by %c1_i32 dim 1 : vector<8x128xf32>, i32 -> vector<8x128xf32>
    %c0_1 = arith.constant 0 : index
    %c0_2 = arith.constant 0 : index
    %2 = vector.load %arg1[%c0_1, %c0_2] : memref<8x128xf32, #tpu.memory_space<vmem>>, vector<8x128xf32>
    tpu.vector_store %arg1[%c0_1, %c0_2], %1 {strides = array<i32>} : memref<8x128xf32, #tpu.memory_space<vmem>>, vector<8x128xf32>,
    return
  }
}

</mosaic_0001>

<llo_original>
// kernel: tpu_custom_call.1
$region0: #{tpu_custom_call.1}
  #allocation0 [shape = 'u32[]', space=smem, size = 0x4, offset = 0x4, fixed_abs, tag = 'smem constant byte address 0x4 - core index']
  #allocation1 [shape = 'u32[144,128]{1,0:T(1,128)}', space=vmem, size = 0x12000, scoped, tag = 'internal scratch']
  %s0 = inlined_call_operand.hbm [shape: f32[8,128], index: 0, kind: input, shape index: {}]
  %s1 = inlined_call_operand.hbm [shape: f32[8,128], index: 1, kind: output, shape index: {}]
  %s2 = sld [smem:[#allocation0]]
  $region18: #{tpu_custom_call.1} parent=0
    _
  %s4 = ssub.s32 1, %s2
  %s5 = scalar_select 0, %s4, %s2
  $region1: #{tpu_custom_call.1} parent=0
    #allocation2 [shape = 'u8[4096]{0}', space=vmem, size = 0x1000, scoped, tag = 'input window, operand 0, single buffered']
    #allocation3 [shape = 's32[1]{0}', space=sflag, size = 0x4, scoped, tag = 'scoped memory for tpu_custom_call.1']
    #allocation4 [shape = 's32[1]{0}', space=sflag, size = 0x4, scoped, tag = 'scoped memory for tpu_custom_call.1']
    #allocation5 [shape = 'u8[4096]{0}', space=vmem, size = 0x1000, scoped, tag = 'output window, operand 0, single buffered']
    %6 = vsyncpa [#allocation3], 0
    %7 = vsyncpa [#allocation4], 0
    // Predicated region
    $region2: #{tpu_custom_call.1} parent=1 // pred_check
      _
    $region3: #{tpu_custom_call.1} parent=1 // pred_check_branch
      %9 = sbr.rel (0) target = $region5
    $region4: #{tpu_custom_call.1} parent=1 // pred_region
      %s11 = ssub.s32 128, 128
      %12 = vsyncadd [#allocation3], %s11
      %s14 = sshll.u32 [#allocation2], 4
      %s15 = int_to_ptr.vmem [resolvable:$true] %s14
      %17 = dma.hbm_to_vmem [thread:$0]  %s0, 128, %s15, [#allocation3]
    $region5: #{tpu_custom_call.1} parent=1 // pred_fallthru
      _
    // Predicated region
    $region6: #{tpu_custom_call.1} parent=1 // pred_check
      _
    $region7: #{tpu_custom_call.1} parent=1 // pred_check_branch
      %19 = sbr.rel (0) target = $region9
    $region8: #{tpu_custom_call.1} parent=1 // pred_region
      %20 = dma.done [#allocation3], 128
    $region9: #{tpu_custom_call.1} parent=1 // pred_fallthru
      _
    %v21 = vld [vmem:[#allocation2] sm:$0xff]
    %22 = vrot.lane.b32.xlu0 %v21, 1
    %v23 = vpop.permute.xlu0 %22
    %24 = vst [vmem:[#allocation5] sm:$0xff] %v23
    // Predicated region
    $region10: #{tpu_custom_call.1} parent=1 // pred_check
      _
    $region11: #{tpu_custom_call.1} parent=1 // pred_check_branch
      %26 = sbr.rel (0) target = $region13
    $region12: #{tpu_custom_call.1} parent=1 // pred_region
      %s28 = ssub.s32 128, 128
      %29 = vsyncadd [#allocation4], %s28
      %s31 = sshll.u32 [#allocation5], 4
      %s32 = int_to_ptr.vmem [resolvable:$true] %s31
      %34 = dma.vmem_to_hbm [thread:$0]  %s32, 128, %s1, [#allocation4]
    $region13: #{tpu_custom_call.1} parent=1 // pred_fallthru
      _
    // Predicated region
    $region14: #{tpu_custom_call.1} parent=1 // pred_check
      _
    $region15: #{tpu_custom_call.1} parent=1 // pred_check_branch
      %36 = sbr.rel (0) target = $region17
    $region16: #{tpu_custom_call.1} parent=1 // pred_region
      %37 = dma.done [#allocation4], 128
    $region17: #{tpu_custom_call.1} parent=1 // pred_fallthru
      _
    %38 = vsyncpa [#allocation3], 1
    %39 = vsyncpa [#allocation4], 1

</llo_original>
